<compile_context>
chip_gen: v6e
topology: v6e:2x2x1
jax: 0.10.0
libtpu: 0.0.40
codegen_flags: <defaults>
</compile_context>

<pallas_src>
import jax
import jax.numpy as jnp
from jax.experimental import pallas as pl
from jax.experimental.pallas import tpu as pltpu

LANE = 128  # TPU lane width


def _round_up(n, m):
    return ((n + m - 1) // m) * m


def dqn_kernel(x_ref, w1_ref, b1_ref, w2_ref, b2_ref, w3_ref, b3_ref, out_ref):
    # fc1 + ReLU (bf16 operands -> f32 accumulate; epilogues in f32)
    h1 = jnp.dot(x_ref[...], w1_ref[...], preferred_element_type=jnp.float32)
    h1 = jnp.maximum(h1 + b1_ref[...], 0.0).astype(jnp.bfloat16)
    # fc2 + ReLU
    h2 = jnp.dot(h1, w2_ref[...], preferred_element_type=jnp.float32)
    h2 = jnp.maximum(h2 + b2_ref[...], 0.0).astype(jnp.bfloat16)
    # fc3 (no activation); store only the real action columns (narrow f32 block).
    q = jnp.dot(h2, w3_ref[...], preferred_element_type=jnp.float32) + b3_ref[...]
    na = out_ref.shape[-1]
    out_ref[...] = q[:, :na].astype(out_ref.dtype)


def _choose_tiling(batch, *, tile_cap=2048, split_threshold=256):
    """Pick (tile_rows, num_tiles): tiles are multiples of 8 sublanes.

    Small batches -> single tile (min per-step overhead). Replay-sized batches
    (>= split_threshold) -> at least 2 tiles so the parallel grid axis feeds both
    v7x TensorCores, with tiles capped at tile_cap rows. Padding waste is bounded
    by 8 rows per tile (no rounding up to a huge tile).
    """
    if batch < split_threshold:
        return _round_up(max(batch, 1), 8), 1
    n = max(2, pl.cdiv(batch, tile_cap))
    tb = _round_up(pl.cdiv(batch, n), 8)
    return tb, n


def dqn_forward(x, params, *, block_batch=None):
    """x: (batch, state_size) f32; params from init_params (lane-padded)."""
    w1, b1 = params["w1"], params["b1"]
    w2, b2 = params["w2"], params["b2"]
    w3, b3 = params["w3"], params["b3"]
    action_size = params["action_size"]

    B, S = x.shape
    H = w1.shape[1]       # 128 (padded hidden)
    A_pad = w3.shape[1]   # 128 (padded actions, compute only)

    if block_batch is not None:
        TB = _round_up(block_batch, 8)
        n_tiles = pl.cdiv(B, TB)
    else:
        TB, n_tiles = _choose_tiling(B)
    B_pad = TB * n_tiles
    if B_pad != B:
        x = jnp.pad(x, ((0, B_pad - B), (0, 0)))
    x = x.astype(jnp.bfloat16)

    grid = (n_tiles,)

    # Advisory cost estimate (padded compute; narrow f32 output traffic).
    param_arrays = (w1, b1, w2, b2, w3, b3)
    param_bytes = sum(int(a.size) * a.dtype.itemsize for a in param_arrays)
    flops = 2 * B_pad * (S * H + H * H + H * A_pad)
    bytes_accessed = B_pad * S * 2 + param_bytes + B_pad * action_size * 4

    # VMEM budget ~2x the double-buffered footprint, clamped to [8, 32] MiB.
    x_tile_bytes = TB * S * 2
    out_tile_bytes = TB * action_size * 4
    inter_bytes = TB * H * (4 + 2) * 2 + TB * A_pad * 4  # h1/h2 f32+bf16, fc3 f32
    footprint = param_bytes + 2 * (x_tile_bytes + out_tile_bytes) + inter_bytes
    vmem_limit = int(min(32 * 1024 * 1024, max(8 * 1024 * 1024, 2 * footprint)))

    out = pl.pallas_call(
        dqn_kernel,
        out_shape=jax.ShapeDtypeStruct((B_pad, action_size), jnp.float32),
        grid_spec=pltpu.PrefetchScalarGridSpec(
            num_scalar_prefetch=0,
            grid=grid,
            in_specs=[
                pl.BlockSpec((TB, S), lambda i: (i, 0)),    # x streams over batch
                pl.BlockSpec(w1.shape, lambda i: (0, 0)),   # weights/biases VMEM-resident
                pl.BlockSpec(b1.shape, lambda i: (0, 0)),
                pl.BlockSpec(w2.shape, lambda i: (0, 0)),
                pl.BlockSpec(b2.shape, lambda i: (0, 0)),
                pl.BlockSpec(w3.shape, lambda i: (0, 0)),
                pl.BlockSpec(b3.shape, lambda i: (0, 0)),
            ],
            # Block last dim == full array dim (action_size), so the narrow
            # (TB, action_size) f32 store is legal; writeback is 16 B/row.
            out_specs=pl.BlockSpec((TB, action_size), lambda i: (i, 0)),
        ),
        compiler_params=pltpu.CompilerParams(
            dimension_semantics=("parallel",),   # shards batch steps across v7x TCs
            vmem_limit_bytes=vmem_limit,
        ),
        cost_estimate=pl.CostEstimate(
            flops=flops, transcendentals=0, bytes_accessed=bytes_accessed
        ),
    )(x, w1, b1, w2, b2, w3, b3)

    # Slice batch padding back out (action columns are already exact width).
    return out[:B]


def init_params(key, state_size, action_size, hidden=64):
    """nn.Linear-style init; weights stored (in, out), zero-padded to 128 lanes, bf16.

    Padded rows/cols/bias entries are zero, so the padded math is exact
    (ReLU(0) = 0 and zero rows contribute nothing downstream).
    """
    H = _round_up(hidden, LANE)
    A = _round_up(action_size, LANE)
    ks = jax.random.split(key, 6)

    def lin(kw, kb, fan_in, fan_out, rows, cols):
        bound = 1.0 / (fan_in ** 0.5)
        w = jax.random.uniform(kw, (fan_in, fan_out), jnp.float32, -bound, bound)
        b = jax.random.uniform(kb, (1, fan_out), jnp.float32, -bound, bound)
        w_p = jnp.zeros((rows, cols), jnp.float32).at[:fan_in, :fan_out].set(w)
        b_p = jnp.zeros((1, cols), jnp.float32).at[:, :fan_out].set(b)
        return w_p.astype(jnp.bfloat16), b_p  # bf16 matmul operands, f32 biases

    w1, b1 = lin(ks[0], ks[1], state_size, hidden, state_size, H)
    w2, b2 = lin(ks[2], ks[3], hidden, hidden, H, H)
    w3, b3 = lin(ks[4], ks[5], hidden, action_size, H, A)
    return {"w1": w1, "b1": b1, "w2": w2, "b2": b2, "w3": w3, "b3": b3,
            "action_size": action_size}


def dqn_reference(x, p):
    """Pure-JAX reference with identical bf16-operand / f32-accumulate numerics."""
    xb = x.astype(jnp.bfloat16)
    h1 = jnp.maximum(
        jnp.dot(xb, p["w1"], preferred_element_type=jnp.float32) + p["b1"], 0.0
    ).astype(jnp.bfloat16)
    h2 = jnp.maximum(
        jnp.dot(h1, p["w2"], preferred_element_type=jnp.float32) + p["b2"], 0.0
    ).astype(jnp.bfloat16)
    out = jnp.dot(h2, p["w3"], preferred_element_type=jnp.float32) + p["b3"]
    return out[:, : p["action_size"]]


if __name__ == "__main__":
    key = jax.random.PRNGKey(0)
    k_params, k_x, k_x2 = jax.random.split(key, 3)

    # Small actor-style batch (single-tile path).
    batch, state_size, action_size = 8, 16, 4
    params = init_params(k_params, state_size, action_size)
    x = jax.random.normal(k_x, (batch, state_size), jnp.float32)

    out = jax.block_until_ready(dqn_forward(x, params))
    ref = jax.block_until_ready(dqn_reference(x, params))
    assert out.shape == (batch, action_size)
    assert jnp.allclose(out, ref, atol=1e-2, rtol=1e-2), float(jnp.max(jnp.abs(out - ref)))

    # Replay-style batch (multi-tile grid + batch-padding path).
    batch2 = 300
    x2 = jax.random.normal(k_x2, (batch2, state_size), jnp.float32)
    out2 = jax.block_until_ready(dqn_forward(x2, params))
    ref2 = jax.block_until_ready(dqn_reference(x2, params))
    assert out2.shape == (batch2, action_size)
    assert jnp.allclose(out2, ref2, atol=1e-2, rtol=1e-2), float(jnp.max(jnp.abs(out2 - ref2)))

    print("KERNEL_OK")
</pallas_src>

<mosaic_0001>
module attributes {stable_mosaic.version = 11 : i64} {
  func.func @dqn_kernel(%arg0: i32, %arg1: memref<8x16xbf16, #tpu.memory_space<vmem>>, %arg2: memref<16x128xbf16, #tpu.memory_space<vmem>>, %arg3: memref<1x128xf32, #tpu.memory_space<vmem>>, %arg4: memref<128x128xbf16, #tpu.memory_space<vmem>>, %arg5: memref<1x128xf32, #tpu.memory_space<vmem>>, %arg6: memref<128x128xbf16, #tpu.memory_space<vmem>>, %arg7: memref<1x128xf32, #tpu.memory_space<vmem>>, %arg8: memref<8x4xf32, #tpu.memory_space<vmem>>) attributes {dimension_semantics = [#tpu.dimension_semantics<parallel>], iteration_bounds = array<i64: 1>, scalar_prefetch = 0 : i64, scratch_operands = 0 : i64, tpu.core_type = #tpu.core_type<tc>, window_params = [{transform_indices = @transform_0, window_bounds = array<i64: 8, 16>}, {pipeline_mode = #tpu.pipeline_mode<synchronous>, transform_indices = @transform_1, window_bounds = array<i64: 16, 128>}, {pipeline_mode = #tpu.pipeline_mode<synchronous>, transform_indices = @transform_2, window_bounds = array<i64: 1, 128>}, {pipeline_mode = #tpu.pipeline_mode<synchronous>, transform_indices = @transform_3, window_bounds = array<i64: 128, 128>}, {pipeline_mode = #tpu.pipeline_mode<synchronous>, transform_indices = @transform_4, window_bounds = array<i64: 1, 128>}, {pipeline_mode = #tpu.pipeline_mode<synchronous>, transform_indices = @transform_5, window_bounds = array<i64: 128, 128>}, {pipeline_mode = #tpu.pipeline_mode<synchronous>, transform_indices = @transform_6, window_bounds = array<i64: 1, 128>}, {transform_indices = @transform_7, window_bounds = array<i64: 8, 4>}]} {
    %c0 = arith.constant 0 : index
    %c0_0 = arith.constant 0 : index
    %0 = vector.load %arg1[%c0, %c0_0] : memref<8x16xbf16, #tpu.memory_space<vmem>>, vector<8x16xbf16>
    %c0_1 = arith.constant 0 : index
    %c0_2 = arith.constant 0 : index
    %1 = vector.load %arg2[%c0_1, %c0_2] : memref<16x128xbf16, #tpu.memory_space<vmem>>, vector<16x128xbf16>
    %cst = arith.constant dense<0.000000e+00> : vector<8x128xf32>
    %2 = tpu.matmul %0, %1, %cst {dimension_numbers = #tpu.dot_dimension_numbers<[1], [0], [0], [1], [0, 0, 1, 1], [], []>} : vector<8x16xbf16>, vector<16x128xbf16>, vector<8x128xf32> -> vector<8x128xf32>
    %c0_3 = arith.constant 0 : index
    %c0_4 = arith.constant 0 : index
    %3 = vector.load %arg3[%c0_3, %c0_4] : memref<1x128xf32, #tpu.memory_space<vmem>>, vector<1x128xf32>
    %4 = vector.broadcast %3 : vector<1x128xf32> to vector<8x128xf32>
    %5 = arith.addf %2, %4 : vector<8x128xf32>
    %cst_5 = arith.constant 0.000000e+00 : f32
    %6 = vector.broadcast %cst_5 : f32 to vector<8x128xf32>
    %7 = arith.maximumf %5, %6 : vector<8x128xf32>
    %8 = arith.truncf %7 : vector<8x128xf32> to vector<8x128xbf16>
    %c0_6 = arith.constant 0 : index
    %c0_7 = arith.constant 0 : index
    %9 = vector.load %arg4[%c0_6, %c0_7] : memref<128x128xbf16, #tpu.memory_space<vmem>>, vector<128x128xbf16>
    %cst_8 = arith.constant dense<0.000000e+00> : vector<8x128xf32>
    %10 = tpu.matmul %8, %9, %cst_8 {dimension_numbers = #tpu.dot_dimension_numbers<[1], [0], [0], [1], [0, 0, 1, 1], [], []>} : vector<8x128xbf16>, vector<128x128xbf16>, vector<8x128xf32> -> vector<8x128xf32>
    %c0_9 = arith.constant 0 : index
    %c0_10 = arith.constant 0 : index
    %11 = vector.load %arg5[%c0_9, %c0_10] : memref<1x128xf32, #tpu.memory_space<vmem>>, vector<1x128xf32>
    %12 = vector.broadcast %11 : vector<1x128xf32> to vector<8x128xf32>
    %13 = arith.addf %10, %12 : vector<8x128xf32>
    %cst_11 = arith.constant 0.000000e+00 : f32
    %14 = vector.broadcast %cst_11 : f32 to vector<8x128xf32>
    %15 = arith.maximumf %13, %14 : vector<8x128xf32>
    %16 = arith.truncf %15 : vector<8x128xf32> to vector<8x128xbf16>
    %c0_12 = arith.constant 0 : index
    %c0_13 = arith.constant 0 : index
    %17 = vector.load %arg6[%c0_12, %c0_13] : memref<128x128xbf16, #tpu.memory_space<vmem>>, vector<128x128xbf16>
    %cst_14 = arith.constant dense<0.000000e+00> : vector<8x128xf32>
    %18 = tpu.matmul %16, %17, %cst_14 {dimension_numbers = #tpu.dot_dimension_numbers<[1], [0], [0], [1], [0, 0, 1, 1], [], []>} : vector<8x128xbf16>, vector<128x128xbf16>, vector<8x128xf32> -> vector<8x128xf32>
    %c0_15 = arith.constant 0 : index
    %c0_16 = arith.constant 0 : index
    %19 = vector.load %arg7[%c0_15, %c0_16] : memref<1x128xf32, #tpu.memory_space<vmem>>, vector<1x128xf32>
    %20 = vector.broadcast %19 : vector<1x128xf32> to vector<8x128xf32>
    %21 = arith.addf %18, %20 : vector<8x128xf32>
    %22 = vector.extract_strided_slice %21 {offsets = [0, 0], sizes = [8, 4], strides = [1, 1]} : vector<8x128xf32> to vector<8x4xf32>
    %c0_17 = arith.constant 0 : index
    %c0_18 = arith.constant 0 : index
    %23 = vector.load %arg8[%c0_17, %c0_18] : memref<8x4xf32, #tpu.memory_space<vmem>>, vector<8x4xf32>
    tpu.vector_store %arg8[%c0_17, %c0_18], %22 {strides = array<i32>} : memref<8x4xf32, #tpu.memory_space<vmem>>, vector<8x4xf32>,
    return
  }
  func.func @transform_0(%arg0: i32) -> (i32, i32) {
    %c0_i32 = arith.constant 0 : i32
    %c0_i32_0 = arith.constant 0 : i32
    return %arg0, %c0_i32 : i32, i32
  }
  func.func @transform_1(%arg0: i32) -> (i32, i32) {
    %c0_i32 = arith.constant 0 : i32
    %c0_i32_0 = arith.constant 0 : i32
    %c0_i32_1 = arith.constant 0 : i32
    return %c0_i32, %c0_i32_0 : i32, i32
  }
  func.func @transform_2(%arg0: i32) -> (i32, i32) {
    %c0_i32 = arith.constant 0 : i32
    %c0_i32_0 = arith.constant 0 : i32
    %c0_i32_1 = arith.constant 0 : i32
    return %c0_i32, %c0_i32_0 : i32, i32
  }
  func.func @transform_3(%arg0: i32) -> (i32, i32) {
    %c0_i32 = arith.constant 0 : i32
    %c0_i32_0 = arith.constant 0 : i32
    %c0_i32_1 = arith.constant 0 : i32
    return %c0_i32, %c0_i32_0 : i32, i32
  }
  func.func @transform_4(%arg0: i32) -> (i32, i32) {
    %c0_i32 = arith.constant 0 : i32
    %c0_i32_0 = arith.constant 0 : i32
    %c0_i32_1 = arith.constant 0 : i32
    return %c0_i32, %c0_i32_0 : i32, i32
  }
  func.func @transform_5(%arg0: i32) -> (i32, i32) {
    %c0_i32 = arith.constant 0 : i32
    %c0_i32_0 = arith.constant 0 : i32
    %c0_i32_1 = arith.constant 0 : i32
    return %c0_i32, %c0_i32_0 : i32, i32
  }
  func.func @transform_6(%arg0: i32) -> (i32, i32) {
    %c0_i32 = arith.constant 0 : i32
    %c0_i32_0 = arith.constant 0 : i32
    %c0_i32_1 = arith.constant 0 : i32
    return %c0_i32, %c0_i32_0 : i32, i32
  }
  func.func @transform_7(%arg0: i32) -> (i32, i32) {
    %c0_i32 = arith.constant 0 : i32
    %c0_i32_0 = arith.constant 0 : i32
    return %arg0, %c0_i32 : i32, i32
  }
}

</mosaic_0001>

<llo_original>
// kernel: tpu_custom_call.1
$region0: #{tpu_custom_call.1}
  #allocation0 [shape = 'u32[]', space=smem, size = 0x4, offset = 0x4, fixed_abs, tag = 'smem constant byte address 0x4 - core index']
  #allocation1 [shape = 'u32[144,128]{1,0:T(1,128)}', space=vmem, size = 0x12000, scoped, tag = 'internal scratch']
  %s0 = inlined_call_operand.hbm [shape: bf16[8,16], index: 0, kind: input, shape index: {}]
  %s1 = inlined_call_operand.hbm [shape: bf16[16,128], index: 1, kind: input, shape index: {}]
  %s2 = inlined_call_operand.vmem [shape: f32[1,128], index: 2, kind: input, shape index: {}]
  %s3 = inlined_call_operand.hbm [shape: bf16[128,128], index: 3, kind: input, shape index: {}]
  %s4 = inlined_call_operand.vmem [shape: f32[1,128], index: 4, kind: input, shape index: {}]
  %s5 = inlined_call_operand.hbm [shape: bf16[128,128], index: 5, kind: input, shape index: {}]
  %s6 = inlined_call_operand.vmem [shape: f32[1,128], index: 6, kind: input, shape index: {}]
  %s7 = inlined_call_operand.vmem [shape: f32[8,4], index: 7, kind: output, shape index: {}]
  %s8 = sld [smem:[#allocation0]]
  $region54: #{tpu_custom_call.1} parent=0
    _
  %s10 = ssub.s32 1, %s8
  %s11 = scalar_select 0, %s10, %s8
  $region1: #{tpu_custom_call.1} parent=0
    #allocation2 [shape = 'u8[2048]{0}', space=vmem, size = 0x800, scoped, tag = 'input window, operand 0, single buffered']
    #allocation3 [shape = 's32[1]{0}', space=sflag, size = 0x4, scoped, tag = 'scoped memory for tpu_custom_call.1']
    #allocation4 [shape = 'u8[4096]{0}', space=vmem, size = 0x1000, scoped, tag = 'input window, operand 1, single buffered']
    #allocation5 [shape = 's32[1]{0}', space=sflag, size = 0x4, scoped, tag = 'scoped memory for tpu_custom_call.1']
    #allocation6 [shape = 'u8[32768]{0}', space=vmem, size = 0x8000, scoped, tag = 'input window, operand 3, single buffered']
    #allocation7 [shape = 'u8[32768]{0}', space=vmem, size = 0x8000, scoped, tag = 'input window, operand 5, single buffered']
    #allocation8 [shape = 's32[1]{0}', space=sflag, size = 0x4, scoped, tag = 'scoped memory for tpu_custom_call.1']
    %12 = vsyncpa [#allocation3], 0
    %13 = vsyncpa [#allocation5], 0
    %14 = vsyncpa [#allocation8], 0
    // Predicated region
    $region2: #{tpu_custom_call.1} parent=1 // pred_check
      _
    $region3: #{tpu_custom_call.1} parent=1 // pred_check_branch
      %16 = sbr.rel (0) target = $region5
    $region4: #{tpu_custom_call.1} parent=1 // pred_region
      %s18 = ssub.s32 64, 64
      %19 = vsyncadd [#allocation3], %s18
      %s21 = sshll.u32 [#allocation2], 4
      %s22 = int_to_ptr.vmem [resolvable:$true] %s21
      %24 = dma.hbm_to_vmem [thread:$0]  %s0, 64, %s22, [#allocation3]
    $region5: #{tpu_custom_call.1} parent=1 // pred_fallthru
      _
    // Predicated region
    $region6: #{tpu_custom_call.1} parent=1 // pred_check
      _
    $region7: #{tpu_custom_call.1} parent=1 // pred_check_branch
      %26 = sbr.rel (0) target = $region9
    $region8: #{tpu_custom_call.1} parent=1 // pred_region
      %s28 = ssub.s32 128, 128
      %29 = vsyncadd [#allocation5], %s28
      %s30 = sshll.u32 [#allocation4], 4
      %s31 = int_to_ptr.vmem [resolvable:$true] %s30
      %36 = dma.hbm_to_vmem [thread:$0]  %s1, 128, %s31, [#allocation5], 64, 64, 4
    $region9: #{tpu_custom_call.1} parent=1 // pred_fallthru
      _
    // Predicated region
    $region10: #{tpu_custom_call.1} parent=1 // pred_check
      _
    $region11: #{tpu_custom_call.1} parent=1 // pred_check_branch
      %38 = sbr.rel (0) target = $region13
    $region12: #{tpu_custom_call.1} parent=1 // pred_region
      _
    $region13: #{tpu_custom_call.1} parent=1 // pred_fallthru
      _
    // Predicated region
    $region14: #{tpu_custom_call.1} parent=1 // pred_check
      _
    $region15: #{tpu_custom_call.1} parent=1 // pred_check_branch
      %40 = sbr.rel (0) target = $region17
    $region16: #{tpu_custom_call.1} parent=1 // pred_region
      %s42 = ssub.s32 1024, 1024
      %43 = vsyncadd [#allocation5], %s42
      %s44 = sshll.u32 [#allocation6], 4
      %s45 = int_to_ptr.vmem [resolvable:$true] %s44
      %50 = dma.hbm_to_vmem [thread:$0]  %s3, 1024, %s45, [#allocation5], 64, 64, 4
    $region17: #{tpu_custom_call.1} parent=1 // pred_fallthru
      _
    // Predicated region
    $region18: #{tpu_custom_call.1} parent=1 // pred_check
      _
    $region19: #{tpu_custom_call.1} parent=1 // pred_check_branch
      %52 = sbr.rel (0) target = $region21
    $region20: #{tpu_custom_call.1} parent=1 // pred_region
      _
    $region21: #{tpu_custom_call.1} parent=1 // pred_fallthru
      _
    // Predicated region
    $region22: #{tpu_custom_call.1} parent=1 // pred_check
      _
    $region23: #{tpu_custom_call.1} parent=1 // pred_check_branch
      %54 = sbr.rel (0) target = $region25
    $region24: #{tpu_custom_call.1} parent=1 // pred_region
      %s56 = ssub.s32 1024, 1024
      %57 = vsyncadd [#allocation8], %s56
      %s58 = sshll.u32 [#allocation7], 4
      %s59 = int_to_ptr.vmem [resolvable:$true] %s58
      %64 = dma.hbm_to_vmem [thread:$0]  %s5, 1024, %s59, [#allocation8], 64, 64, 4
    $region25: #{tpu_custom_call.1} parent=1 // pred_fallthru
      _
    // Predicated region
    $region26: #{tpu_custom_call.1} parent=1 // pred_check
      _
    $region27: #{tpu_custom_call.1} parent=1 // pred_check_branch
      %66 = sbr.rel (0) target = $region29
    $region28: #{tpu_custom_call.1} parent=1 // pred_region
      _
    $region29: #{tpu_custom_call.1} parent=1 // pred_fallthru
      _
    // Predicated region
    $region30: #{tpu_custom_call.1} parent=1 // pred_check
      _
    $region31: #{tpu_custom_call.1} parent=1 // pred_check_branch
      %68 = sbr.rel (0) target = $region33
    $region32: #{tpu_custom_call.1} parent=1 // pred_region
      %69 = dma.done [#allocation3], 64
    $region33: #{tpu_custom_call.1} parent=1 // pred_fallthru
      _
    // Predicated region
    $region34: #{tpu_custom_call.1} parent=1 // pred_check
      _
    $region35: #{tpu_custom_call.1} parent=1 // pred_check_branch
      %71 = sbr.rel (0) target = $region37
    $region36: #{tpu_custom_call.1} parent=1 // pred_region
      %72 = dma.done [#allocation5], 128
    $region37: #{tpu_custom_call.1} parent=1 // pred_fallthru
      _
    // Predicated region
    $region38: #{tpu_custom_call.1} parent=1 // pred_check
      _
    $region39: #{tpu_custom_call.1} parent=1 // pred_check_branch
      %74 = sbr.rel (0) target = $region41
    $region40: #{tpu_custom_call.1} parent=1 // pred_region
      %75 = dma.done [#allocation5], 1024
    $region41: #{tpu_custom_call.1} parent=1 // pred_fallthru
      _
    // Predicated region
    $region42: #{tpu_custom_call.1} parent=1 // pred_check
      _
    $region43: #{tpu_custom_call.1} parent=1 // pred_check_branch
      %77 = sbr.rel (0) target = $region45
    $region44: #{tpu_custom_call.1} parent=1 // pred_region
      %78 = dma.done [#allocation8], 1024
    $region45: #{tpu_custom_call.1} parent=1 // pred_fallthru
      _
    %v80 = vld [vmem:[#allocation2] sm:$0xf]
    %v81 = vld [vmem:[#allocation4] sm:$0xf]
    %v82 = vld [vmem:[#allocation4 + $0x4] sm:$0xf]
    %v83 = vld [vmem:[%s2] sm:$0x1]
    %v85 = vlaneseq
    %v86 = vshrl.u32 %v85, 7
    %v87 = vsub.s32 0, %v86
    %v88 = vrot.slane %v83, %v87
    %v92 = vunpack.c.l.b16 %v81
    %v93 = vunpack.c.l.b16 %v82
    %v94 = vpack.c.b16 %v93, %v92
    %vm96 = vcmask 130048
    %v98 = vsel %vm96, %v80, 0
    %100 = vmatprep.subr.bf16.mxu0 0
    %101 = vmatpush1.bf16.msra.mxu0 0
    %102 = vmatprep.subr.bf16.mxu0 0
    %103 = vmatpush1.bf16.msra.mxu0 0
    %104 = vmatprep.subr.bf16.mxu0 0
    %105 = vmatpush1.bf16.msra.mxu0 0
    %106 = vmatprep.subr.bf16.mxu0 0
    %107 = vmatpush1.bf16.msra.mxu0 0
    %108 = vmatprep.subr.bf16.mxu0 0
    %109 = vmatpush1.bf16.msra.mxu0 0
    %110 = vmatprep.subr.bf16.mxu0 0
    %111 = vmatpush1.bf16.msra.mxu0 0
    %112 = vmatprep.subr.bf16.mxu0 0
    %113 = vmatpush1.bf16.msra.mxu0 0
    %114 = vmatprep.subr.bf16.mxu0 0
    %115 = vmatpush1.bf16.msra.mxu0 %v94
    %116 = vmatprep.subr.bf16.mxu0 0
    %117 = vmatpush2.bf16.msra.mxu0 0
    %118 = vmatprep.subr.bf16.mxu0 0
    %119 = vmatpush2.bf16.msra.mxu0 0
    %120 = vmatprep.subr.bf16.mxu0 0
    %121 = vmatpush2.bf16.msra.mxu0 0
    %122 = vmatprep.subr.bf16.mxu0 0
    %123 = vmatpush2.bf16.msra.mxu0 0
    %124 = vmatprep.subr.bf16.mxu0 0
    %125 = vmatpush2.bf16.msra.mxu0 0
    %126 = vmatprep.subr.bf16.mxu0 0
    %127 = vmatpush2.bf16.msra.mxu0 0
    %128 = vmatprep.subr.bf16.mxu0 0
    %129 = vmatpush2.bf16.msra.mxu0 0
    %130 = vmatprep.subr.bf16.mxu0 0
    %131 = vmatpush2.bf16.msra.mxu0 0
    %132 = vmatprep.mubr.bf16.mxu0 0
    %133 = vmatmul.mubr.bf16.gmra.mxu0 %v98
    %v134 = vpop.f32.mrf.mxu0
    %v135 = vadd.f32 %v88, %v134
    %v136 = vpop.f32.mrf.mxu0
    %v137 = vpop.f32.mrf.mxu0
    %v138 = vpop.f32.mrf.mxu0
    %139 = vdwg.mxu0
    %v140 = vmax.f32 %v135, 0.0
    %v141 = vpack.c.bf16 %v140, %v140
    %v142 = vld [vmem:[#allocation6] sm:$0xf]
    %v143 = vld [vmem:[#allocation6 + $0x4] sm:$0xf]
    %v144 = vld [vmem:[#allocation6 + $0x8] sm:$0xf]
    %v145 = vld [vmem:[#allocation6 + $0xc] sm:$0xf]
    %v146 = vld [vmem:[#allocation6 + $0x10] sm:$0xf]
    %v147 = vld [vmem:[#allocation6 + $0x14] sm:$0xf]
    %v148 = vld [vmem:[#allocation6 + $0x18] sm:$0xf]
    %v149 = vld [vmem:[#allocation6 + $0x1c] sm:$0xf]
    %v150 = vld [vmem:[#allocation6 + $0x20] sm:$0xf]
    %v151 = vld [vmem:[#allocation6 + $0x24] sm:$0xf]
    %v152 = vld [vmem:[#allocation6 + $0x28] sm:$0xf]
    %v153 = vld [vmem:[#allocation6 + $0x2c] sm:$0xf]
    %v154 = vld [vmem:[#allocation6 + $0x30] sm:$0xf]
    %v155 = vld [vmem:[#allocation6 + $0x34] sm:$0xf]
    %v156 = vld [vmem:[#allocation6 + $0x38] sm:$0xf]
    %v157 = vld [vmem:[#allocation6 + $0x3c] sm:$0xf]
    %v158 = vld [vmem:[%s4] sm:$0x1]
    %v160 = vlaneseq
    %v161 = vshrl.u32 %v160, 7
    %v162 = vsub.s32 0, %v161
    %v163 = vrot.slane %v158, %v162
    %v181 = vunpack.c.l.b16 %v142
    %v182 = vunpack.c.l.b16 %v143
    %v183 = vunpack.c.l.b16 %v144
    %v184 = vunpack.c.l.b16 %v145
    %v185 = vunpack.c.l.b16 %v146
    %v186 = vunpack.c.l.b16 %v147
    %v187 = vunpack.c.l.b16 %v148
    %v188 = vunpack.c.l.b16 %v149
    %v189 = vunpack.c.l.b16 %v150
    %v190 = vunpack.c.l.b16 %v151
    %v191 = vunpack.c.l.b16 %v152
    %v192 = vunpack.c.l.b16 %v153
    %v193 = vunpack.c.l.b16 %v154
    %v194 = vunpack.c.l.b16 %v155
    %v195 = vunpack.c.l.b16 %v156
    %v196 = vunpack.c.l.b16 %v157
    %v197 = vpack.c.b16 %v182, %v181
    %v198 = vpack.c.b16 %v184, %v183
    %v199 = vpack.c.b16 %v186, %v185
    %v200 = vpack.c.b16 %v188, %v187
    %v201 = vpack.c.b16 %v190, %v189
    %v202 = vpack.c.b16 %v192, %v191
    %v203 = vpack.c.b16 %v194, %v193
    %v204 = vpack.c.b16 %v196, %v195
    %213 = vmatprep.subr.bf16.mxu0 0
    %214 = vmatpush1.bf16.msra.mxu0 %v204
    %215 = vmatprep.subr.bf16.mxu0 0
    %216 = vmatpush1.bf16.msra.mxu0 %v203
    %217 = vmatprep.subr.bf16.mxu0 0
    %218 = vmatpush1.bf16.msra.mxu0 %v202
    %219 = vmatprep.subr.bf16.mxu0 0
    %220 = vmatpush1.bf16.msra.mxu0 %v201
    %221 = vmatprep.subr.bf16.mxu0 0
    %222 = vmatpush1.bf16.msra.mxu0 %v200
    %223 = vmatprep.subr.bf16.mxu0 0
    %224 = vmatpush1.bf16.msra.mxu0 %v199
    %225 = vmatprep.subr.bf16.mxu0 0
    %226 = vmatpush1.bf16.msra.mxu0 %v198
    %227 = vmatprep.subr.bf16.mxu0 0
    %228 = vmatpush1.bf16.msra.mxu0 %v197
    %229 = vmatprep.subr.bf16.mxu0 0
    %230 = vmatpush2.bf16.msra.mxu0 0
    %231 = vmatprep.subr.bf16.mxu0 0
    %232 = vmatpush2.bf16.msra.mxu0 0
    %233 = vmatprep.subr.bf16.mxu0 0
    %234 = vmatpush2.bf16.msra.mxu0 0
    %235 = vmatprep.subr.bf16.mxu0 0
    %236 = vmatpush2.bf16.msra.mxu0 0
    %237 = vmatprep.subr.bf16.mxu0 0
    %238 = vmatpush2.bf16.msra.mxu0 0
    %239 = vmatprep.subr.bf16.mxu0 0
    %240 = vmatpush2.bf16.msra.mxu0 0
    %241 = vmatprep.subr.bf16.mxu0 0
    %242 = vmatpush2.bf16.msra.mxu0 0
    %243 = vmatprep.subr.bf16.mxu0 0
    %244 = vmatpush2.bf16.msra.mxu0 0
    %245 = vmatprep.mubr.bf16.mxu0 0
    %246 = vmatmul.mubr.bf16.gmra.mxu0 %v141
    %v247 = vpop.f32.mrf.mxu0
    %v248 = vadd.f32 %v163, %v247
    %v249 = vpop.f32.mrf.mxu0
    %v250 = vpop.f32.mrf.mxu0
    %v251 = vpop.f32.mrf.mxu0
    %252 = vdwg.mxu0
    %v253 = vmax.f32 %v248, 0.0
    %v254 = vpack.c.bf16 %v253, %v253
    %v255 = vld [vmem:[#allocation7] sm:$0xf]
    %v256 = vld [vmem:[#allocation7 + $0x4] sm:$0xf]
    %v257 = vld [vmem:[#allocation7 + $0x8] sm:$0xf]
    %v258 = vld [vmem:[#allocation7 + $0xc] sm:$0xf]
    %v259 = vld [vmem:[#allocation7 + $0x10] sm:$0xf]
    %v260 = vld [vmem:[#allocation7 + $0x14] sm:$0xf]
    %v261 = vld [vmem:[#allocation7 + $0x18] sm:$0xf]
    %v262 = vld [vmem:[#allocation7 + $0x1c] sm:$0xf]
    %v263 = vld [vmem:[#allocation7 + $0x20] sm:$0xf]
    %v264 = vld [vmem:[#allocation7 + $0x24] sm:$0xf]
    %v265 = vld [vmem:[#allocation7 + $0x28] sm:$0xf]
    %v266 = vld [vmem:[#allocation7 + $0x2c] sm:$0xf]
    %v267 = vld [vmem:[#allocation7 + $0x30] sm:$0xf]
    %v268 = vld [vmem:[#allocation7 + $0x34] sm:$0xf]
    %v269 = vld [vmem:[#allocation7 + $0x38] sm:$0xf]
    %v270 = vld [vmem:[#allocation7 + $0x3c] sm:$0xf]
    %v271 = vld [vmem:[%s6] sm:$0x1]
    %v273 = vlaneseq
    %v274 = vshrl.u32 %v273, 7
    %v275 = vsub.s32 0, %v274
    %v276 = vrot.slane %v271, %v275
    %v294 = vunpack.c.l.b16 %v255
    %v295 = vunpack.c.l.b16 %v256
    %v296 = vunpack.c.l.b16 %v257
    %v297 = vunpack.c.l.b16 %v258
    %v298 = vunpack.c.l.b16 %v259
    %v299 = vunpack.c.l.b16 %v260
    %v300 = vunpack.c.l.b16 %v261
    %v301 = vunpack.c.l.b16 %v262
    %v302 = vunpack.c.l.b16 %v263
    %v303 = vunpack.c.l.b16 %v264
    %v304 = vunpack.c.l.b16 %v265
    %v305 = vunpack.c.l.b16 %v266
    %v306 = vunpack.c.l.b16 %v267
    %v307 = vunpack.c.l.b16 %v268
    %v308 = vunpack.c.l.b16 %v269
    %v309 = vunpack.c.l.b16 %v270
    %v310 = vpack.c.b16 %v295, %v294
    %v311 = vpack.c.b16 %v297, %v296
    %v312 = vpack.c.b16 %v299, %v298
    %v313 = vpack.c.b16 %v301, %v300
    %v314 = vpack.c.b16 %v303, %v302
    %v315 = vpack.c.b16 %v305, %v304
    %v316 = vpack.c.b16 %v307, %v306
    %v317 = vpack.c.b16 %v309, %v308
    %326 = vmatprep.subr.bf16.mxu0 0
    %327 = vmatpush1.bf16.msra.mxu0 %v317
    %328 = vmatprep.subr.bf16.mxu0 0
    %329 = vmatpush1.bf16.msra.mxu0 %v316
    %330 = vmatprep.subr.bf16.mxu0 0
    %331 = vmatpush1.bf16.msra.mxu0 %v315
    %332 = vmatprep.subr.bf16.mxu0 0
    %333 = vmatpush1.bf16.msra.mxu0 %v314
    %334 = vmatprep.subr.bf16.mxu0 0
    %335 = vmatpush1.bf16.msra.mxu0 %v313
    %336 = vmatprep.subr.bf16.mxu0 0
    %337 = vmatpush1.bf16.msra.mxu0 %v312
    %338 = vmatprep.subr.bf16.mxu0 0
    %339 = vmatpush1.bf16.msra.mxu0 %v311
    %340 = vmatprep.subr.bf16.mxu0 0
    %341 = vmatpush1.bf16.msra.mxu0 %v310
    %342 = vmatprep.subr.bf16.mxu0 0
    %343 = vmatpush2.bf16.msra.mxu0 0
    %344 = vmatprep.subr.bf16.mxu0 0
    %345 = vmatpush2.bf16.msra.mxu0 0
    %346 = vmatprep.subr.bf16.mxu0 0
    %347 = vmatpush2.bf16.msra.mxu0 0
    %348 = vmatprep.subr.bf16.mxu0 0
    %349 = vmatpush2.bf16.msra.mxu0 0
    %350 = vmatprep.subr.bf16.mxu0 0
    %351 = vmatpush2.bf16.msra.mxu0 0
    %352 = vmatprep.subr.bf16.mxu0 0
    %353 = vmatpush2.bf16.msra.mxu0 0
    %354 = vmatprep.subr.bf16.mxu0 0
    %355 = vmatpush2.bf16.msra.mxu0 0
    %356 = vmatprep.subr.bf16.mxu0 0
    %357 = vmatpush2.bf16.msra.mxu0 0
    %358 = vmatprep.mubr.bf16.mxu0 0
    %359 = vmatmul.mubr.bf16.gmra.mxu0 %v254
    %v360 = vpop.f32.mrf.mxu0
    %v361 = vadd.f32 %v276, %v360
    %v362 = vpop.f32.mrf.mxu0
    %v363 = vpop.f32.mrf.mxu0
    %v364 = vpop.f32.mrf.mxu0
    %365 = vdwg.mxu0
    %vm366 = vcmask 31744
    %367 = vst.msk [vmem:[%s7] sm:$0xff] %vm366, %v361
    // Predicated region
    $region46: #{tpu_custom_call.1} parent=1 // pred_check
      _
    $region47: #{tpu_custom_call.1} parent=1 // pred_check_branch
      %369 = sbr.rel (0) target = $region49
    $region48: #{tpu_custom_call.1} parent=1 // pred_region
      _
    $region49: #{tpu_custom_call.1} parent=1 // pred_fallthru
      _
    // Predicated region
    $region50: #{tpu_custom_call.1} parent=1 // pred_check
      _
    $region51: #{tpu_custom_call.1} parent=1 // pred_check_branch
      %371 = sbr.rel (0) target = $region53
    $region52: #{tpu_custom_call.1} parent=1 // pred_region
      _
    $region53: #{tpu_custom_call.1} parent=1 // pred_fallthru
      _
    %372 = vsyncpa [#allocation3], 1
    %373 = vsyncpa [#allocation5], 1
    %374 = vsyncpa [#allocation8], 1

</llo_original>
